<compile_context>
chip_gen: v7x
topology: tpu7x:2x2x1
jax: 0.10.0
libtpu: 0.0.40
codegen_flags: <defaults>
</compile_context>

<pallas_src>
import functools

import jax
import jax.numpy as jnp
from jax import lax
from jax.experimental import pallas as pl
from jax.experimental.pallas import tpu as pltpu

EPS = 1e-5
SLOPE = 0.2


def _leaky_relu(x):
    return jnp.maximum(x, SLOPE * x)


def _bn_lrelu(h, gamma, beta, inv_b):
    """Fused training-mode BatchNorm1d + LeakyReLU(0.2) on (features, batch).

    One-pass statistics (sum and sum-of-squares over the batch/lane axis),
    then a single fused scale/shift + activation pass over h.
    Kept entirely in f32 (E[x^2]-E[x]^2 form is less stable than two-pass).
    """
    s1 = jnp.sum(h, axis=1, keepdims=True)
    s2 = jnp.sum(h * h, axis=1, keepdims=True)
    mean = s1 * inv_b
    var = s2 * inv_b - mean * mean               # biased variance (PyTorch default)
    a = gamma * lax.rsqrt(var + EPS)             # per-feature scale  (ndf, 1)
    b = beta - mean * a                          # per-feature shift  (ndf, 1)
    y = h * a + b
    return _leaky_relu(y)


def latent_disc_kernel(x_ref, w_ref, vec_ref, o_ref, *, nlatent, ndf):
    x = x_ref[...].astype(jnp.float32)           # (B, nlatent)
    vec = vec_ref[...].astype(jnp.float32)       # (ndf, 8) packed per-feature params
    g1, be1 = vec[:, 0:1], vec[:, 1:2]
    g2, be2 = vec[:, 2:3], vec[:, 3:4]
    g3, be3 = vec[:, 4:5], vec[:, 5:6]
    w4c = vec[:, 6:7]                            # final Linear weight as a column
    b4 = vec[0:1, 7:8]                           # final Linear bias (scalar)

    inv_b = jnp.float32(1.0 / x.shape[0])        # B is static at trace time

    w = w_ref[...].astype(jnp.float32)           # (3, ndf, K), K = max(nlatent, ndf)
    w1 = w[0][:, :nlatent]                       # static slices: zero padding dropped
    w2 = w[1][:, :ndf]
    w3 = w[2][:, :ndf]

    # Linear biases b1/b2/b3 are omitted: a per-feature constant added before
    # training-mode BatchNorm is cancelled exactly by the mean subtraction.
    # First layer consumes x untransposed: (ndf, nlatent) x (B, nlatent)^T -> (ndf, B).
    dn = (((1,), (1,)), ((), ()))
    h = lax.dot_general(w1, x, dn, preferred_element_type=jnp.float32)
    h = _bn_lrelu(h, g1, be1, inv_b)

    h = jnp.dot(w2, h, preferred_element_type=jnp.float32)      # (ndf, B)
    h = _bn_lrelu(h, g2, be2, inv_b)

    h = jnp.dot(w3, h, preferred_element_type=jnp.float32)      # (ndf, B)
    h = _bn_lrelu(h, g3, be3, inv_b)

    # ndf -> 1 projection: VPU multiply + sublane reduce, lane-dense (1, B) out.
    out = jnp.sum(h * w4c, axis=0, keepdims=True) + b4
    o_ref[...] = out.astype(o_ref.dtype)


def init_params(key, nlatent, ndf, dtype=jnp.float32):
    """Synthetic init mimicking utils.init_weights (gaussian 0.02), PyTorch layouts."""
    ks = jax.random.split(key, 14)
    return {
        # Linear weights kept in native PyTorch (out, in) layout.
        "w1": jax.random.normal(ks[0], (ndf, nlatent), dtype) * 0.02,
        "b1": jax.random.normal(ks[1], (ndf,), dtype) * 0.02,
        "g1": 1.0 + jax.random.normal(ks[2], (ndf,), dtype) * 0.02,
        "be1": jax.random.normal(ks[3], (ndf,), dtype) * 0.02,
        "w2": jax.random.normal(ks[4], (ndf, ndf), dtype) * 0.02,
        "b2": jax.random.normal(ks[5], (ndf,), dtype) * 0.02,
        "g2": 1.0 + jax.random.normal(ks[6], (ndf,), dtype) * 0.02,
        "be2": jax.random.normal(ks[7], (ndf,), dtype) * 0.02,
        "w3": jax.random.normal(ks[8], (ndf, ndf), dtype) * 0.02,
        "b3": jax.random.normal(ks[9], (ndf,), dtype) * 0.02,
        "g3": 1.0 + jax.random.normal(ks[10], (ndf,), dtype) * 0.02,
        "be3": jax.random.normal(ks[11], (ndf,), dtype) * 0.02,
        "w4": jax.random.normal(ks[12], (1, ndf), dtype) * 0.02,
        "b4": jax.random.normal(ks[13], (1,), dtype) * 0.02,
    }


def latent_discriminator_forward(x, params, nlatent):
    # Glue: flatten 4-D input (B, nlatent, 1, 1) -> (B, nlatent), like .view().
    if x.ndim == 4:
        x = x.reshape(x.shape[0], nlatent)
    B = x.shape[0]
    ndf = params["w1"].shape[0]
    K = max(nlatent, ndf)

    # One (3, ndf, K) weight stack: all layer weights ship as one DMA descriptor.
    w1p = jnp.pad(params["w1"], ((0, 0), (0, K - nlatent)))
    w2p = jnp.pad(params["w2"], ((0, 0), (0, K - ndf)))
    w3p = jnp.pad(params["w3"], ((0, 0), (0, K - ndf)))
    w_stack = jnp.stack([w1p, w2p, w3p])                      # (3, ndf, K)

    vecs = jnp.stack(                                         # (ndf, 8)
        [params["g1"], params["be1"],
         params["g2"], params["be2"],
         params["g3"], params["be3"],
         params["w4"][0],
         jnp.broadcast_to(params["b4"], (ndf,))],
        axis=1,
    )
    # b1/b2/b3 intentionally not passed: cancelled by training-mode BatchNorm.
    # TODO(synk): reinstate linear biases if eval-mode (running-stats) BN is needed.

    cost = pl.CostEstimate(
        flops=2 * B * (nlatent * ndf + 2 * ndf * ndf + ndf),
        transcendentals=3 * ndf,
        bytes_accessed=4 * (B * nlatent + 3 * ndf * K + ndf * 8 + B),
    )

    vmem = pl.BlockSpec(memory_space=pltpu.MemorySpace.VMEM)
    out_row = pl.pallas_call(
        functools.partial(latent_disc_kernel, nlatent=nlatent, ndf=ndf),
        out_shape=jax.ShapeDtypeStruct((1, B), jnp.float32),  # lane-dense output
        in_specs=[vmem, vmem, vmem],
        out_specs=vmem,
        compiler_params=pltpu.CompilerParams(vmem_limit_bytes=32 * 1024 * 1024),
        cost_estimate=cost,
    )(x, w_stack, vecs)

    # Module returns (B, 1).
    return out_row.reshape(B, 1)


def reference_forward(x, params, nlatent):
    """Pure-JAX reference with full PyTorch semantics (including b1/b2/b3)."""
    if x.ndim == 4:
        x = x.reshape(x.shape[0], nlatent)
    x = x.astype(jnp.float32)

    def bn(h, g, b):
        mean = jnp.mean(h, axis=0, keepdims=True)
        var = jnp.mean((h - mean) ** 2, axis=0, keepdims=True)
        return (h - mean) * lax.rsqrt(var + EPS) * g + b

    def lrelu(h):
        return jnp.where(h > 0, h, SLOPE * h)

    h = x @ params["w1"].T + params["b1"]
    h = lrelu(bn(h, params["g1"], params["be1"]))
    h = h @ params["w2"].T + params["b2"]
    h = lrelu(bn(h, params["g2"], params["be2"]))
    h = h @ params["w3"].T + params["b3"]
    h = lrelu(bn(h, params["g3"], params["be3"]))
    return h @ params["w4"].T + params["b4"]


if __name__ == "__main__":
    nlatent, ndf, B = 16, 32, 8

    key = jax.random.PRNGKey(0)
    k_in, k_params = jax.random.split(key)

    # 4-D input as the module would see from a conv encoder: (B, nlatent, 1, 1)
    x = jax.random.normal(k_in, (B, nlatent, 1, 1), jnp.float32)
    params = init_params(k_params, nlatent, ndf)

    out = latent_discriminator_forward(x, params, nlatent)
    out = jax.block_until_ready(out)

    ref = reference_forward(x, params, nlatent)
    assert out.shape == (B, 1), out.shape
    assert jnp.allclose(out, ref, atol=1e-4, rtol=1e-4), (out, ref)

    print("KERNEL_OK")
</pallas_src>

<mosaic_0001>
module attributes {stable_mosaic.version = 11 : i64} {
  func.func @latent_disc_kernel(%arg0: memref<8x16xf32, #tpu.memory_space<vmem>>, %arg1: memref<3x32x32xf32, #tpu.memory_space<vmem>>, %arg2: memref<32x8xf32, #tpu.memory_space<vmem>>, %arg3: memref<1x8xf32, #tpu.memory_space<vmem>>) attributes {dimension_semantics = [], scalar_prefetch = 0 : i64, scratch_operands = 0 : i64, tpu.core_type = #tpu.core_type<tc>} {
    %c0 = arith.constant 0 : index
    %c0_0 = arith.constant 0 : index
    %0 = vector.load %arg0[%c0, %c0_0] : memref<8x16xf32, #tpu.memory_space<vmem>>, vector<8x16xf32>
    %c0_1 = arith.constant 0 : index
    %c0_2 = arith.constant 0 : index
    %1 = vector.load %arg2[%c0_1, %c0_2] : memref<32x8xf32, #tpu.memory_space<vmem>>, vector<32x8xf32>
    %2 = vector.extract_strided_slice %1 {offsets = [0, 0], sizes = [32, 1], strides = [1, 1]} : vector<32x8xf32> to vector<32x1xf32>
    %3 = vector.extract_strided_slice %1 {offsets = [0, 1], sizes = [32, 1], strides = [1, 1]} : vector<32x8xf32> to vector<32x1xf32>
    %4 = vector.extract_strided_slice %1 {offsets = [0, 2], sizes = [32, 1], strides = [1, 1]} : vector<32x8xf32> to vector<32x1xf32>
    %5 = vector.extract_strided_slice %1 {offsets = [0, 3], sizes = [32, 1], strides = [1, 1]} : vector<32x8xf32> to vector<32x1xf32>
    %6 = vector.extract_strided_slice %1 {offsets = [0, 4], sizes = [32, 1], strides = [1, 1]} : vector<32x8xf32> to vector<32x1xf32>
    %7 = vector.extract_strided_slice %1 {offsets = [0, 5], sizes = [32, 1], strides = [1, 1]} : vector<32x8xf32> to vector<32x1xf32>
    %8 = vector.extract_strided_slice %1 {offsets = [0, 6], sizes = [32, 1], strides = [1, 1]} : vector<32x8xf32> to vector<32x1xf32>
    %9 = vector.extract_strided_slice %1 {offsets = [0, 7], sizes = [1, 1], strides = [1, 1]} : vector<32x8xf32> to vector<1x1xf32>
    %c0_3 = arith.constant 0 : index
    %c0_4 = arith.constant 0 : index
    %c0_5 = arith.constant 0 : index
    %10 = vector.load %arg1[%c0_3, %c0_4, %c0_5] : memref<3x32x32xf32, #tpu.memory_space<vmem>>, vector<3x32x32xf32>
    %11 = vector.extract_strided_slice %10 {offsets = [0, 0, 0], sizes = [1, 32, 32], strides = [1, 1, 1]} : vector<3x32x32xf32> to vector<1x32x32xf32>
    %12 = vector.shape_cast %11 : vector<1x32x32xf32> to vector<32x32xf32>
    %13 = vector.extract_strided_slice %12 {offsets = [0, 0], sizes = [32, 16], strides = [1, 1]} : vector<32x32xf32> to vector<32x16xf32>
    %14 = vector.extract_strided_slice %10 {offsets = [1, 0, 0], sizes = [1, 32, 32], strides = [1, 1, 1]} : vector<3x32x32xf32> to vector<1x32x32xf32>
    %15 = vector.shape_cast %14 : vector<1x32x32xf32> to vector<32x32xf32>
    %16 = vector.extract_strided_slice %10 {offsets = [2, 0, 0], sizes = [1, 32, 32], strides = [1, 1, 1]} : vector<3x32x32xf32> to vector<1x32x32xf32>
    %17 = vector.shape_cast %16 : vector<1x32x32xf32> to vector<32x32xf32>
    %cst = arith.constant dense<0.000000e+00> : vector<32x8xf32>
    %18 = tpu.matmul %13, %0, %cst {dimension_numbers = #tpu.dot_dimension_numbers<[1], [1], [0], [0], [0, 0, 1, 0], [], []>} : vector<32x16xf32>, vector<8x16xf32>, vector<32x8xf32> -> vector<32x8xf32>
    %cst_6 = arith.constant dense<0.000000e+00> : vector<32xf32>
    %19 = vector.multi_reduction <add>, %18, %cst_6 [1] : vector<32x8xf32> to vector<32xf32>
    %20 = vector.shape_cast %19 : vector<32xf32> to vector<32x1xf32>
    %21 = arith.mulf %18, %18 : vector<32x8xf32>
    %cst_7 = arith.constant dense<0.000000e+00> : vector<32xf32>
    %22 = vector.multi_reduction <add>, %21, %cst_7 [1] : vector<32x8xf32> to vector<32xf32>
    %23 = vector.shape_cast %22 : vector<32xf32> to vector<32x1xf32>
    %cst_8 = arith.constant 1.250000e-01 : f32
    %24 = vector.broadcast %cst_8 : f32 to vector<32x1xf32>
    %25 = arith.mulf %20, %24 : vector<32x1xf32>
    %cst_9 = arith.constant 1.250000e-01 : f32
    %26 = vector.broadcast %cst_9 : f32 to vector<32x1xf32>
    %27 = arith.mulf %23, %26 : vector<32x1xf32>
    %28 = arith.mulf %25, %25 : vector<32x1xf32>
    %29 = arith.subf %27, %28 : vector<32x1xf32>
    %cst_10 = arith.constant 9.99999974E-6 : f32
    %30 = vector.broadcast %cst_10 : f32 to vector<32x1xf32>
    %31 = arith.addf %29, %30 : vector<32x1xf32>
    %32 = math.rsqrt %31 : vector<32x1xf32>
    %33 = arith.mulf %2, %32 : vector<32x1xf32>
    %34 = arith.mulf %25, %33 : vector<32x1xf32>
    %35 = arith.subf %3, %34 : vector<32x1xf32>
    %36 = vector.broadcast %33 : vector<32x1xf32> to vector<32x8xf32>
    %37 = arith.mulf %18, %36 : vector<32x8xf32>
    %38 = vector.broadcast %35 : vector<32x1xf32> to vector<32x8xf32>
    %39 = arith.addf %37, %38 : vector<32x8xf32>
    %cst_11 = arith.constant 2.000000e-01 : f32
    %40 = vector.broadcast %cst_11 : f32 to vector<32x8xf32>
    %41 = arith.mulf %40, %39 : vector<32x8xf32>
    %42 = arith.maximumf %39, %41 : vector<32x8xf32>
    %cst_12 = arith.constant dense<0.000000e+00> : vector<32x8xf32>
    %43 = tpu.matmul %15, %42, %cst_12 {dimension_numbers = #tpu.dot_dimension_numbers<[1], [0], [0], [1], [0, 0, 1, 1], [], []>} : vector<32x32xf32>, vector<32x8xf32>, vector<32x8xf32> -> vector<32x8xf32>
    %cst_13 = arith.constant dense<0.000000e+00> : vector<32xf32>
    %44 = vector.multi_reduction <add>, %43, %cst_13 [1] : vector<32x8xf32> to vector<32xf32>
    %45 = vector.shape_cast %44 : vector<32xf32> to vector<32x1xf32>
    %46 = arith.mulf %43, %43 : vector<32x8xf32>
    %cst_14 = arith.constant dense<0.000000e+00> : vector<32xf32>
    %47 = vector.multi_reduction <add>, %46, %cst_14 [1] : vector<32x8xf32> to vector<32xf32>
    %48 = vector.shape_cast %47 : vector<32xf32> to vector<32x1xf32>
    %cst_15 = arith.constant 1.250000e-01 : f32
    %49 = vector.broadcast %cst_15 : f32 to vector<32x1xf32>
    %50 = arith.mulf %45, %49 : vector<32x1xf32>
    %cst_16 = arith.constant 1.250000e-01 : f32
    %51 = vector.broadcast %cst_16 : f32 to vector<32x1xf32>
    %52 = arith.mulf %48, %51 : vector<32x1xf32>
    %53 = arith.mulf %50, %50 : vector<32x1xf32>
    %54 = arith.subf %52, %53 : vector<32x1xf32>
    %cst_17 = arith.constant 9.99999974E-6 : f32
    %55 = vector.broadcast %cst_17 : f32 to vector<32x1xf32>
    %56 = arith.addf %54, %55 : vector<32x1xf32>
    %57 = math.rsqrt %56 : vector<32x1xf32>
    %58 = arith.mulf %4, %57 : vector<32x1xf32>
    %59 = arith.mulf %50, %58 : vector<32x1xf32>
    %60 = arith.subf %5, %59 : vector<32x1xf32>
    %61 = vector.broadcast %58 : vector<32x1xf32> to vector<32x8xf32>
    %62 = arith.mulf %43, %61 : vector<32x8xf32>
    %63 = vector.broadcast %60 : vector<32x1xf32> to vector<32x8xf32>
    %64 = arith.addf %62, %63 : vector<32x8xf32>
    %cst_18 = arith.constant 2.000000e-01 : f32
    %65 = vector.broadcast %cst_18 : f32 to vector<32x8xf32>
    %66 = arith.mulf %65, %64 : vector<32x8xf32>
    %67 = arith.maximumf %64, %66 : vector<32x8xf32>
    %cst_19 = arith.constant dense<0.000000e+00> : vector<32x8xf32>
    %68 = tpu.matmul %17, %67, %cst_19 {dimension_numbers = #tpu.dot_dimension_numbers<[1], [0], [0], [1], [0, 0, 1, 1], [], []>} : vector<32x32xf32>, vector<32x8xf32>, vector<32x8xf32> -> vector<32x8xf32>
    %cst_20 = arith.constant dense<0.000000e+00> : vector<32xf32>
    %69 = vector.multi_reduction <add>, %68, %cst_20 [1] : vector<32x8xf32> to vector<32xf32>
    %70 = vector.shape_cast %69 : vector<32xf32> to vector<32x1xf32>
    %71 = arith.mulf %68, %68 : vector<32x8xf32>
    %cst_21 = arith.constant dense<0.000000e+00> : vector<32xf32>
    %72 = vector.multi_reduction <add>, %71, %cst_21 [1] : vector<32x8xf32> to vector<32xf32>
    %73 = vector.shape_cast %72 : vector<32xf32> to vector<32x1xf32>
    %cst_22 = arith.constant 1.250000e-01 : f32
    %74 = vector.broadcast %cst_22 : f32 to vector<32x1xf32>
    %75 = arith.mulf %70, %74 : vector<32x1xf32>
    %cst_23 = arith.constant 1.250000e-01 : f32
    %76 = vector.broadcast %cst_23 : f32 to vector<32x1xf32>
    %77 = arith.mulf %73, %76 : vector<32x1xf32>
    %78 = arith.mulf %75, %75 : vector<32x1xf32>
    %79 = arith.subf %77, %78 : vector<32x1xf32>
    %cst_24 = arith.constant 9.99999974E-6 : f32
    %80 = vector.broadcast %cst_24 : f32 to vector<32x1xf32>
    %81 = arith.addf %79, %80 : vector<32x1xf32>
    %82 = math.rsqrt %81 : vector<32x1xf32>
    %83 = arith.mulf %6, %82 : vector<32x1xf32>
    %84 = arith.mulf %75, %83 : vector<32x1xf32>
    %85 = arith.subf %7, %84 : vector<32x1xf32>
    %86 = vector.broadcast %83 : vector<32x1xf32> to vector<32x8xf32>
    %87 = arith.mulf %68, %86 : vector<32x8xf32>
    %88 = vector.broadcast %85 : vector<32x1xf32> to vector<32x8xf32>
    %89 = arith.addf %87, %88 : vector<32x8xf32>
    %cst_25 = arith.constant 2.000000e-01 : f32
    %90 = vector.broadcast %cst_25 : f32 to vector<32x8xf32>
    %91 = arith.mulf %90, %89 : vector<32x8xf32>
    %92 = arith.maximumf %89, %91 : vector<32x8xf32>
    %93 = vector.broadcast %8 : vector<32x1xf32> to vector<32x8xf32>
    %94 = arith.mulf %92, %93 : vector<32x8xf32>
    %cst_26 = arith.constant dense<0.000000e+00> : vector<8xf32>
    %95 = vector.multi_reduction <add>, %94, %cst_26 [0] : vector<32x8xf32> to vector<8xf32>
    %96 = vector.shape_cast %95 : vector<8xf32> to vector<1x8xf32>
    %97 = vector.broadcast %9 : vector<1x1xf32> to vector<1x8xf32>
    %98 = arith.addf %96, %97 : vector<1x8xf32>
    %c0_27 = arith.constant 0 : index
    %c0_28 = arith.constant 0 : index
    %99 = vector.load %arg3[%c0_27, %c0_28] : memref<1x8xf32, #tpu.memory_space<vmem>>, vector<1x8xf32>
    tpu.vector_store %arg3[%c0_27, %c0_28], %98 {strides = array<i32>} : memref<1x8xf32, #tpu.memory_space<vmem>>, vector<1x8xf32>,
    return
  }
}

</mosaic_0001>

<llo_original>
// kernel: tpu_custom_call.1
$region0: #{tpu_custom_call.1}
  #allocation0 [shape = 'u32[]', space=smem, size = 0x4, offset = 0x4, fixed_abs, tag = 'smem constant byte address 0x4 - core index']
  #allocation1 [shape = 'u32[144,128]{1,0:T(1,128)}', space=vmem, size = 0x12000, scoped, tag = 'internal scratch']
  %s0 = inlined_call_operand.vmem [shape: f32[8,16], index: 0, kind: input, shape index: {}]
  %s1 = inlined_call_operand.hbm [shape: f32[3,32,32], index: 1, kind: input, shape index: {}]
  %s2 = inlined_call_operand.vmem [shape: f32[32,8], index: 2, kind: input, shape index: {}]
  %s3 = inlined_call_operand.hbm [shape: f32[1,8], index: 3, kind: output, shape index: {}]
  %s4 = sld [smem:[#allocation0]]
  $region26: #{tpu_custom_call.1} parent=0
    _
  %s6 = ssub.s32 1, %s4
  %s7 = scalar_select 0, %s6, %s4
  $region1: #{tpu_custom_call.1} parent=0
    #allocation2 [shape = 'u8[49152]{0}', space=vmem, size = 0xc000, scoped, tag = 'input window, operand 1, single buffered']
    #allocation3 [shape = 's32[1]{0}', space=sflag, size = 0x4, scoped, tag = 'scoped memory for tpu_custom_call.1']
    #allocation4 [shape = 's32[1]{0}', space=sflag, size = 0x4, scoped, tag = 'scoped memory for tpu_custom_call.1']
    #allocation5 [shape = 'u8[512]{0}', space=vmem, size = 0x400, scoped, tag = 'output window, operand 0, single buffered']
    %8 = vsyncpa [#allocation3], 0
    %9 = vsyncpa [#allocation4], 0
    // Predicated region
    $region2: #{tpu_custom_call.1} parent=1 // pred_check
      _
    $region3: #{tpu_custom_call.1} parent=1 // pred_check_branch
      %11 = sbr.rel (0) target = $region5
    $region4: #{tpu_custom_call.1} parent=1 // pred_region
      _
    $region5: #{tpu_custom_call.1} parent=1 // pred_fallthru
      _
    // Predicated region
    $region6: #{tpu_custom_call.1} parent=1 // pred_check
      _
    $region7: #{tpu_custom_call.1} parent=1 // pred_check_branch
      %13 = sbr.rel (0) target = $region9
    $region8: #{tpu_custom_call.1} parent=1 // pred_region
      %s15 = ssub.s32 1536, 1536
      %16 = vsyncadd [#allocation3], %s15
      %s17 = sshll.u32 [#allocation2], 4
      %s18 = int_to_ptr.vmem [resolvable:$true] %s17
      %23 = dma.hbm_to_vmem [thread:$0]  %s1, 1536, %s18, [#allocation3], 128, 128, 8
    $region9: #{tpu_custom_call.1} parent=1 // pred_fallthru
      _
    // Predicated region
    $region10: #{tpu_custom_call.1} parent=1 // pred_check
      _
    $region11: #{tpu_custom_call.1} parent=1 // pred_check_branch
      %25 = sbr.rel (0) target = $region13
    $region12: #{tpu_custom_call.1} parent=1 // pred_region
      _
    $region13: #{tpu_custom_call.1} parent=1 // pred_fallthru
      _
    // Predicated region
    $region14: #{tpu_custom_call.1} parent=1 // pred_check
      _
    $region15: #{tpu_custom_call.1} parent=1 // pred_check_branch
      %27 = sbr.rel (0) target = $region17
    $region16: #{tpu_custom_call.1} parent=1 // pred_region
      %28 = dma.done [#allocation3], 1536
    $region17: #{tpu_custom_call.1} parent=1 // pred_fallthru
      _
    %v29 = vld [vmem:[%s0] sm:$0xff]
    %v30 = vld [vmem:[%s2] sm:$0xff]
    %v31 = vld [vmem:[%s2 + $0x8] sm:$0xff]
    %v32 = vld [vmem:[%s2 + $0x10] sm:$0xff]
    %v33 = vld [vmem:[%s2 + $0x18] sm:$0xff]
    %v34 = vld [vmem:[#allocation2] sm:$0xff]
    %v35 = vld [vmem:[#allocation2 + $0x8] sm:$0xff]
    %v36 = vld [vmem:[#allocation2 + $0x10] sm:$0xff]
    %v37 = vld [vmem:[#allocation2 + $0x18] sm:$0xff]
    %v38 = vld [vmem:[#allocation2 + $0x20] sm:$0xff]
    %v39 = vld [vmem:[#allocation2 + $0x28] sm:$0xff]
    %v40 = vld [vmem:[#allocation2 + $0x30] sm:$0xff]
    %v41 = vld [vmem:[#allocation2 + $0x38] sm:$0xff]
    %v42 = vld [vmem:[#allocation2 + $0x40] sm:$0xff]
    %v43 = vld [vmem:[#allocation2 + $0x48] sm:$0xff]
    %v44 = vld [vmem:[#allocation2 + $0x50] sm:$0xff]
    %v45 = vld [vmem:[#allocation2 + $0x58] sm:$0xff]
    %vm46 = vcmask 130048
    %v48 = vsel %vm46, %v34, 0
    %v51 = vsel %vm46, %v35, 0
    %v54 = vsel %vm46, %v36, 0
    %v57 = vsel %vm46, %v37, 0
    %v60 = vsel %vm46, %v29, 0
    %62 = vmatprep.subr.mxu0 0.0
    %63 = vmatpush1.xpose.msra.mxu0 %v60
    %64 = vmatprep.subr.mxu0 0.0
    %65 = vmatpush1.xpose.msra.mxu0 0.0
    %66 = vmatprep.subr.mxu0 0.0
    %67 = vmatpush1.xpose.msra.mxu0 0.0
    %68 = vmatprep.subr.mxu0 0.0
    %69 = vmatpush1.xpose.msra.mxu0 0.0
    %70 = vmatprep.subr.mxu0 0.0
    %71 = vmatpush1.xpose.msra.mxu0 0.0
    %72 = vmatprep.subr.mxu0 0.0
    %73 = vmatpush1.xpose.msra.mxu0 0.0
    %74 = vmatprep.subr.mxu0 0.0
    %75 = vmatpush1.xpose.msra.mxu0 0.0
    %76 = vmatprep.subr.mxu0 0.0
    %77 = vmatpush1.xpose.msra.mxu0 0.0
    %78 = vmatprep.subr.mxu0 0.0
    %79 = vmatpush1.xpose.msra.mxu0 0.0
    %80 = vmatprep.subr.mxu0 0.0
    %81 = vmatpush1.xpose.msra.mxu0 0.0
    %82 = vmatprep.subr.mxu0 0.0
    %83 = vmatpush1.xpose.msra.mxu0 0.0
    %84 = vmatprep.subr.mxu0 0.0
    %85 = vmatpush1.xpose.msra.mxu0 0.0
    %86 = vmatprep.subr.mxu0 0.0
    %87 = vmatpush1.xpose.msra.mxu0 0.0
    %88 = vmatprep.subr.mxu0 0.0
    %89 = vmatpush1.xpose.msra.mxu0 0.0
    %90 = vmatprep.subr.mxu0 0.0
    %91 = vmatpush1.xpose.msra.mxu0 0.0
    %92 = vmatprep.subr.mxu0 0.0
    %93 = vmatpush1.xpose.msra.mxu0 0.0
    %94 = vmatprep.subr.mxu0 0.0
    %95 = vmatpush1.xpose.msra.mxu0 0.0
    %96 = vmatprep.subr.mxu0 0.0
    %97 = vmatpush1.xpose.msra.mxu0 0.0
    %98 = vmatprep.subr.mxu0 0.0
    %99 = vmatpush1.xpose.msra.mxu0 0.0
    %100 = vmatprep.subr.mxu0 0.0
    %101 = vmatpush1.xpose.msra.mxu0 0.0
    %102 = vmatprep.subr.mxu0 0.0
    %103 = vmatpush1.xpose.msra.mxu0 0.0
    %104 = vmatprep.subr.mxu0 0.0
    %105 = vmatpush1.xpose.msra.mxu0 0.0
    %106 = vmatprep.subr.mxu0 0.0
    %107 = vmatpush1.xpose.msra.mxu0 0.0
    %108 = vmatprep.subr.mxu0 0.0
    %109 = vmatpush1.xpose.msra.mxu0 0.0
    %110 = vmatprep.subr.mxu0 0.0
    %111 = vmatpush1.xpose.msra.mxu0 0.0
    %112 = vmatprep.subr.mxu0 0.0
    %113 = vmatpush1.xpose.msra.mxu0 0.0
    %114 = vmatprep.subr.mxu0 0.0
    %115 = vmatpush1.xpose.msra.mxu0 0.0
    %116 = vmatprep.subr.mxu0 0.0
    %117 = vmatpush1.xpose.msra.mxu0 0.0
    %118 = vmatprep.subr.mxu0 0.0
    %119 = vmatpush1.xpose.msra.mxu0 0.0
    %120 = vmatprep.subr.mxu0 0.0
    %121 = vmatpush1.xpose.msra.mxu0 0.0
    %122 = vmatprep.subr.mxu0 0.0
    %123 = vmatpush1.xpose.msra.mxu0 0.0
    %124 = vmatprep.subr.mxu0 0.0
    %125 = vmatpush1.xpose.msra.mxu0 0.0
    %126 = vmatprep.mubr.f32.mxu0 0.0
    %127 = vmatmul.mubr.f32.gmra.mrb[0].mxu0 %v48
    %v128 = vpop.f32.mrb[0].mxu0
    %v129 = vadd.f32 0.0, %v128
    %v130 = vpop.f32.mrb[0].mxu0
    %131 = vmatprep.mubr.f32.mxu0 0.0
    %132 = vmatmul.mubr.f32.gmra.mrb[0].mxu0 %v51
    %v133 = vpop.f32.mrb[0].mxu0
    %v134 = vadd.f32 0.0, %v133
    %v135 = vpop.f32.mrb[0].mxu0
    %136 = vmatprep.mubr.f32.mxu0 0.0
    %137 = vmatmul.mubr.f32.gmra.mrb[0].mxu0 %v54
    %v138 = vpop.f32.mrb[0].mxu0
    %v139 = vadd.f32 0.0, %v138
    %v140 = vpop.f32.mrb[0].mxu0
    %141 = vmatprep.mubr.f32.mxu0 0.0
    %142 = vmatmul.mubr.f32.gmra.mrb[0].mxu0 %v57
    %v143 = vpop.f32.mrb[0].mxu0
    %v144 = vadd.f32 0.0, %v143
    %v145 = vpop.f32.mrb[0].mxu0
    %146 = vdwg.mxu0
    %vm147 = vcmask 64512
    %v148 = vsel %vm147, %v129, 0.0
    %149 = vadd.xlane.f32.xlu0 %v148
    %v150 = vpop.xlane.xlu0 %149
    %v151 = vsel %vm147, %v134, 0.0
    %152 = vadd.xlane.f32.xlu0 %v151
    %v153 = vpop.xlane.xlu0 %152
    %v154 = vsel %vm147, %v139, 0.0
    %155 = vadd.xlane.f32.xlu0 %v154
    %v156 = vpop.xlane.xlu0 %155
    %v157 = vsel %vm147, %v144, 0.0
    %158 = vadd.xlane.f32.xlu0 %v157
    %v159 = vpop.xlane.xlu0 %158
    %v160 = vmul.f32 %v129, %v129
    %v161 = vmul.f32 %v134, %v134
    %v162 = vmul.f32 %v139, %v139
    %v163 = vmul.f32 %v144, %v144
    %v164 = vsel %vm147, %v160, 0.0
    %165 = vadd.xlane.f32.xlu0 %v164
    %v166 = vpop.xlane.xlu0 %165
    %v167 = vsel %vm147, %v161, 0.0
    %168 = vadd.xlane.f32.xlu0 %v167
    %v169 = vpop.xlane.xlu0 %168
    %v170 = vsel %vm147, %v162, 0.0
    %171 = vadd.xlane.f32.xlu0 %v170
    %v172 = vpop.xlane.xlu0 %171
    %v173 = vsel %vm147, %v163, 0.0
    %174 = vadd.xlane.f32.xlu0 %v173
    %v175 = vpop.xlane.xlu0 %174
    %v176 = vmul.f32 %v150, 0.125
    %v177 = vmul.f32 %v153, 0.125
    %v178 = vmul.f32 %v156, 0.125
    %v179 = vmul.f32 %v159, 0.125
    %v180 = vmul.f32 %v166, 0.125
    %v181 = vmul.f32 %v169, 0.125
    %v182 = vmul.f32 %v172, 0.125
    %v183 = vmul.f32 %v175, 0.125
    %v184 = vmul.f32 %v176, %v176
    %v185 = vmul.f32 %v177, %v177
    %v186 = vmul.f32 %v178, %v178
    %v187 = vmul.f32 %v179, %v179
    %v188 = vsub.f32 %v180, %v184
    %v189 = vsub.f32 %v181, %v185
    %v190 = vsub.f32 %v182, %v186
    %v191 = vsub.f32 %v183, %v187
    %v192 = vadd.f32 %v188, 1e-05
    %v193 = vadd.f32 %v189, 1e-05
    %v194 = vadd.f32 %v190, 1e-05
    %v195 = vadd.f32 %v191, 1e-05
    %v196 = vrsqrt.pop %v192
    %v197 = vrsqrt.pop %v193
    %v198 = vrsqrt.pop %v194
    %v199 = vrsqrt.pop %v195
    %v200 = vmul.f32 %v30, %v196
    %v201 = vmul.f32 %v31, %v197
    %v202 = vmul.f32 %v32, %v198
    %v203 = vmul.f32 %v33, %v199
    %v204 = vmul.f32 %v176, %v200
    %v205 = vmul.f32 %v177, %v201
    %v206 = vmul.f32 %v178, %v202
    %v207 = vmul.f32 %v179, %v203
    %212 = vrot.lane.b32.xlu0 %v204, 1
    %v213 = vpop.permute.xlu0 %212
    %214 = vrot.lane.b32.xlu0 %v205, 1
    %v215 = vpop.permute.xlu0 %214
    %216 = vrot.lane.b32.xlu0 %v206, 1
    %v217 = vpop.permute.xlu0 %216
    %218 = vrot.lane.b32.xlu0 %v207, 1
    %v219 = vpop.permute.xlu0 %218
    %v224 = vsub.f32 %v30, %v213
    %v225 = vsub.f32 %v31, %v215
    %v226 = vsub.f32 %v32, %v217
    %v227 = vsub.f32 %v33, %v219
    %229 = vset.pattern.permute.xlu0 0
    %230 = vperm.xlu0 %229, %v200
    %v231 = vpop.permute.xlu0 %230
    %234 = vset.pattern.permute.xlu0 0
    %235 = vperm.xlu0 %234, %v201
    %v236 = vpop.permute.xlu0 %235
    %239 = vset.pattern.permute.xlu0 0
    %240 = vperm.xlu0 %239, %v202
    %v241 = vpop.permute.xlu0 %240
    %244 = vset.pattern.permute.xlu0 0
    %245 = vperm.xlu0 %244, %v203
    %v246 = vpop.permute.xlu0 %245
    %v248 = vmul.f32 %v129, %v231
    %v249 = vmul.f32 %v134, %v236
    %v250 = vmul.f32 %v139, %v241
    %v251 = vmul.f32 %v144, %v246
    %253 = vset.pattern.permute.xlu0 1
    %254 = vperm.xlu0 %253, %v224
    %v255 = vpop.permute.xlu0 %254
    %258 = vset.pattern.permute.xlu0 1
    %259 = vperm.xlu0 %258, %v225
    %v260 = vpop.permute.xlu0 %259
    %263 = vset.pattern.permute.xlu0 1
    %264 = vperm.xlu0 %263, %v226
    %v265 = vpop.permute.xlu0 %264
    %268 = vset.pattern.permute.xlu0 1
    %269 = vperm.xlu0 %268, %v227
    %v270 = vpop.permute.xlu0 %269
    %v272 = vadd.f32 %v248, %v255
    %v273 = vadd.f32 %v249, %v260
    %v274 = vadd.f32 %v250, %v265
    %v275 = vadd.f32 %v251, %v270
    %v276 = vmul.f32 %v272, 0.2
    %v277 = vmul.f32 %v273, 0.2
    %v278 = vmul.f32 %v274, 0.2
    %v279 = vmul.f32 %v275, 0.2
    %v280 = vmax.f32 %v272, %v276
    %v281 = vmax.f32 %v273, %v277
    %v282 = vmax.f32 %v274, %v278
    %v283 = vmax.f32 %v275, %v279
    %vm284 = vcmask 261120
    %v286 = vsel %vm284, %v38, 0
    %v289 = vsel %vm284, %v39, 0
    %v292 = vsel %vm284, %v40, 0
    %v295 = vsel %vm284, %v41, 0
    %297 = vmatprep.subr.mxu0 0.0
    %298 = vmatpush1.msra.mxu0 %v280
    %299 = vmatprep.subr.mxu0 0.0
    %300 = vmatpush1.msra.mxu0 %v281
    %301 = vmatprep.subr.mxu0 0.0
    %302 = vmatpush1.msra.mxu0 %v282
    %303 = vmatprep.subr.mxu0 0.0
    %304 = vmatpush1.msra.mxu0 %v283
    %305 = vmatprep.subr.mxu0 0.0
    %306 = vmatpush1.msra.mxu0 0.0
    %307 = vmatprep.subr.mxu0 0.0
    %308 = vmatpush1.msra.mxu0 0.0
    %309 = vmatprep.subr.mxu0 0.0
    %310 = vmatpush1.msra.mxu0 0.0
    %311 = vmatprep.subr.mxu0 0.0
    %312 = vmatpush1.msra.mxu0 0.0
    %313 = vmatprep.subr.mxu0 0.0
    %314 = vmatpush1.msra.mxu0 0.0
    %315 = vmatprep.subr.mxu0 0.0
    %316 = vmatpush1.msra.mxu0 0.0
    %317 = vmatprep.subr.mxu0 0.0
    %318 = vmatpush1.msra.mxu0 0.0
    %319 = vmatprep.subr.mxu0 0.0
    %320 = vmatpush1.msra.mxu0 0.0
    %321 = vmatprep.subr.mxu0 0.0
    %322 = vmatpush1.msra.mxu0 0.0
    %323 = vmatprep.subr.mxu0 0.0
    %324 = vmatpush1.msra.mxu0 0.0
    %325 = vmatprep.subr.mxu0 0.0
    %326 = vmatpush1.msra.mxu0 0.0
    %327 = vmatprep.subr.mxu0 0.0
    %328 = vmatpush1.msra.mxu0 0.0
    %329 = vmatprep.subr.mxu0 0.0
    %330 = vmatpush1.msra.mxu0 0.0
    %331 = vmatprep.subr.mxu0 0.0
    %332 = vmatpush1.msra.mxu0 0.0
    %333 = vmatprep.subr.mxu0 0.0
    %334 = vmatpush1.msra.mxu0 0.0
    %335 = vmatprep.subr.mxu0 0.0
    %336 = vmatpush1.msra.mxu0 0.0
    %337 = vmatprep.subr.mxu0 0.0
    %338 = vmatpush1.msra.mxu0 0.0
    %339 = vmatprep.subr.mxu0 0.0
    %340 = vmatpush1.msra.mxu0 0.0
    %341 = vmatprep.subr.mxu0 0.0
    %342 = vmatpush1.msra.mxu0 0.0
    %343 = vmatprep.subr.mxu0 0.0
    %344 = vmatpush1.msra.mxu0 0.0
    %345 = vmatprep.subr.mxu0 0.0
    %346 = vmatpush1.msra.mxu0 0.0
    %347 = vmatprep.subr.mxu0 0.0
    %348 = vmatpush1.msra.mxu0 0.0
    %349 = vmatprep.subr.mxu0 0.0
    %350 = vmatpush1.msra.mxu0 0.0
    %351 = vmatprep.subr.mxu0 0.0
    %352 = vmatpush1.msra.mxu0 0.0
    %353 = vmatprep.subr.mxu0 0.0
    %354 = vmatpush1.msra.mxu0 0.0
    %355 = vmatprep.subr.mxu0 0.0
    %356 = vmatpush1.msra.mxu0 0.0
    %357 = vmatprep.subr.mxu0 0.0
    %358 = vmatpush1.msra.mxu0 0.0
    %359 = vmatprep.subr.mxu0 0.0
    %360 = vmatpush1.msra.mxu0 0.0
    %361 = vmatprep.mubr.f32.mxu0 0.0
    %362 = vmatmul.mubr.f32.gmra.mrb[0].mxu0 %v286
    %v363 = vpop.f32.mrb[0].mxu0
    %v364 = vadd.f32 0.0, %v363
    %v365 = vpop.f32.mrb[0].mxu0
    %366 = vmatprep.mubr.f32.mxu0 0.0
    %367 = vmatmul.mubr.f32.gmra.mrb[0].mxu0 %v289
    %v368 = vpop.f32.mrb[0].mxu0
    %v369 = vadd.f32 0.0, %v368
    %v370 = vpop.f32.mrb[0].mxu0
    %371 = vmatprep.mubr.f32.mxu0 0.0
    %372 = vmatmul.mubr.f32.gmra.mrb[0].mxu0 %v292
    %v373 = vpop.f32.mrb[0].mxu0
    %v374 = vadd.f32 0.0, %v373
    %v375 = vpop.f32.mrb[0].mxu0
    %376 = vmatprep.mubr.f32.mxu0 0.0
    %377 = vmatmul.mubr.f32.gmra.mrb[0].mxu0 %v295
    %v378 = vpop.f32.mrb[0].mxu0
    %v379 = vadd.f32 0.0, %v378
    %v380 = vpop.f32.mrb[0].mxu0
    %381 = vdwg.mxu0
    %v382 = vsel %vm147, %v364, 0.0
    %383 = vadd.xlane.f32.xlu0 %v382
    %v384 = vpop.xlane.xlu0 %383
    %v385 = vsel %vm147, %v369, 0.0
    %386 = vadd.xlane.f32.xlu0 %v385
    %v387 = vpop.xlane.xlu0 %386
    %v388 = vsel %vm147, %v374, 0.0
    %389 = vadd.xlane.f32.xlu0 %v388
    %v390 = vpop.xlane.xlu0 %389
    %v391 = vsel %vm147, %v379, 0.0
    %392 = vadd.xlane.f32.xlu0 %v391
    %v393 = vpop.xlane.xlu0 %392
    %v394 = vmul.f32 %v364, %v364
    %v395 = vmul.f32 %v369, %v369
    %v396 = vmul.f32 %v374, %v374
    %v397 = vmul.f32 %v379, %v379
    %v398 = vsel %vm147, %v394, 0.0
    %399 = vadd.xlane.f32.xlu0 %v398
    %v400 = vpop.xlane.xlu0 %399
    %v401 = vsel %vm147, %v395, 0.0
    %402 = vadd.xlane.f32.xlu0 %v401
    %v403 = vpop.xlane.xlu0 %402
    %v404 = vsel %vm147, %v396, 0.0
    %405 = vadd.xlane.f32.xlu0 %v404
    %v406 = vpop.xlane.xlu0 %405
    %v407 = vsel %vm147, %v397, 0.0
    %408 = vadd.xlane.f32.xlu0 %v407
    %v409 = vpop.xlane.xlu0 %408
    %v410 = vmul.f32 %v384, 0.125
    %v411 = vmul.f32 %v387, 0.125
    %v412 = vmul.f32 %v390, 0.125
    %v413 = vmul.f32 %v393, 0.125
    %v414 = vmul.f32 %v400, 0.125
    %v415 = vmul.f32 %v403, 0.125
    %v416 = vmul.f32 %v406, 0.125
    %v417 = vmul.f32 %v409, 0.125
    %v418 = vmul.f32 %v410, %v410
    %v419 = vmul.f32 %v411, %v411
    %v420 = vmul.f32 %v412, %v412
    %v421 = vmul.f32 %v413, %v413
    %v422 = vsub.f32 %v414, %v418
    %v423 = vsub.f32 %v415, %v419
    %v424 = vsub.f32 %v416, %v420
    %v425 = vsub.f32 %v417, %v421
    %v426 = vadd.f32 %v422, 1e-05
    %v427 = vadd.f32 %v423, 1e-05
    %v428 = vadd.f32 %v424, 1e-05
    %v429 = vadd.f32 %v425, 1e-05
    %v430 = vrsqrt.pop %v426
    %v431 = vrsqrt.pop %v427
    %v432 = vrsqrt.pop %v428
    %v433 = vrsqrt.pop %v429
    %v434 = vmul.f32 %v30, %v430
    %v435 = vmul.f32 %v31, %v431
    %v436 = vmul.f32 %v32, %v432
    %v437 = vmul.f32 %v33, %v433
    %v438 = vmul.f32 %v410, %v434
    %v439 = vmul.f32 %v411, %v435
    %v440 = vmul.f32 %v412, %v436
    %v441 = vmul.f32 %v413, %v437
    %446 = vrot.lane.b32.xlu0 %v438, 1
    %v447 = vpop.permute.xlu0 %446
    %448 = vrot.lane.b32.xlu0 %v439, 1
    %v449 = vpop.permute.xlu0 %448
    %450 = vrot.lane.b32.xlu0 %v440, 1
    %v451 = vpop.permute.xlu0 %450
    %452 = vrot.lane.b32.xlu0 %v441, 1
    %v453 = vpop.permute.xlu0 %452
    %v458 = vsub.f32 %v30, %v447
    %v459 = vsub.f32 %v31, %v449
    %v460 = vsub.f32 %v32, %v451
    %v461 = vsub.f32 %v33, %v453
    %463 = vset.pattern.permute.xlu0 2
    %464 = vperm.xlu0 %463, %v434
    %v465 = vpop.permute.xlu0 %464
    %468 = vset.pattern.permute.xlu0 2
    %469 = vperm.xlu0 %468, %v435
    %v470 = vpop.permute.xlu0 %469
    %473 = vset.pattern.permute.xlu0 2
    %474 = vperm.xlu0 %473, %v436
    %v475 = vpop.permute.xlu0 %474
    %478 = vset.pattern.permute.xlu0 2
    %479 = vperm.xlu0 %478, %v437
    %v480 = vpop.permute.xlu0 %479
    %v482 = vmul.f32 %v364, %v465
    %v483 = vmul.f32 %v369, %v470
    %v484 = vmul.f32 %v374, %v475
    %v485 = vmul.f32 %v379, %v480
    %487 = vset.pattern.permute.xlu0 3
    %488 = vperm.xlu0 %487, %v458
    %v489 = vpop.permute.xlu0 %488
    %492 = vset.pattern.permute.xlu0 3
    %493 = vperm.xlu0 %492, %v459
    %v494 = vpop.permute.xlu0 %493
    %497 = vset.pattern.permute.xlu0 3
    %498 = vperm.xlu0 %497, %v460
    %v499 = vpop.permute.xlu0 %498
    %502 = vset.pattern.permute.xlu0 3
    %503 = vperm.xlu0 %502, %v461
    %v504 = vpop.permute.xlu0 %503
    %v506 = vadd.f32 %v482, %v489
    %v507 = vadd.f32 %v483, %v494
    %v508 = vadd.f32 %v484, %v499
    %v509 = vadd.f32 %v485, %v504
    %v510 = vmul.f32 %v506, 0.2
    %v511 = vmul.f32 %v507, 0.2
    %v512 = vmul.f32 %v508, 0.2
    %v513 = vmul.f32 %v509, 0.2
    %v514 = vmax.f32 %v506, %v510
    %v515 = vmax.f32 %v507, %v511
    %v516 = vmax.f32 %v508, %v512
    %v517 = vmax.f32 %v509, %v513
    %v519 = vsel %vm284, %v42, 0
    %v522 = vsel %vm284, %v43, 0
    %v525 = vsel %vm284, %v44, 0
    %v528 = vsel %vm284, %v45, 0
    %530 = vmatprep.subr.mxu0 0.0
    %531 = vmatpush1.msra.mxu0 %v514
    %532 = vmatprep.subr.mxu0 0.0
    %533 = vmatpush1.msra.mxu0 %v515
    %534 = vmatprep.subr.mxu0 0.0
    %535 = vmatpush1.msra.mxu0 %v516
    %536 = vmatprep.subr.mxu0 0.0
    %537 = vmatpush1.msra.mxu0 %v517
    %538 = vmatprep.subr.mxu0 0.0
    %539 = vmatpush1.msra.mxu0 0.0
    %540 = vmatprep.subr.mxu0 0.0
    %541 = vmatpush1.msra.mxu0 0.0
    %542 = vmatprep.subr.mxu0 0.0
    %543 = vmatpush1.msra.mxu0 0.0
    %544 = vmatprep.subr.mxu0 0.0
    %545 = vmatpush1.msra.mxu0 0.0
    %546 = vmatprep.subr.mxu0 0.0
    %547 = vmatpush1.msra.mxu0 0.0
    %548 = vmatprep.subr.mxu0 0.0
    %549 = vmatpush1.msra.mxu0 0.0
    %550 = vmatprep.subr.mxu0 0.0
    %551 = vmatpush1.msra.mxu0 0.0
    %552 = vmatprep.subr.mxu0 0.0
    %553 = vmatpush1.msra.mxu0 0.0
    %554 = vmatprep.subr.mxu0 0.0
    %555 = vmatpush1.msra.mxu0 0.0
    %556 = vmatprep.subr.mxu0 0.0
    %557 = vmatpush1.msra.mxu0 0.0
    %558 = vmatprep.subr.mxu0 0.0
    %559 = vmatpush1.msra.mxu0 0.0
    %560 = vmatprep.subr.mxu0 0.0
    %561 = vmatpush1.msra.mxu0 0.0
    %562 = vmatprep.subr.mxu0 0.0
    %563 = vmatpush1.msra.mxu0 0.0
    %564 = vmatprep.subr.mxu0 0.0
    %565 = vmatpush1.msra.mxu0 0.0
    %566 = vmatprep.subr.mxu0 0.0
    %567 = vmatpush1.msra.mxu0 0.0
    %568 = vmatprep.subr.mxu0 0.0
    %569 = vmatpush1.msra.mxu0 0.0
    %570 = vmatprep.subr.mxu0 0.0
    %571 = vmatpush1.msra.mxu0 0.0
    %572 = vmatprep.subr.mxu0 0.0
    %573 = vmatpush1.msra.mxu0 0.0
    %574 = vmatprep.subr.mxu0 0.0
    %575 = vmatpush1.msra.mxu0 0.0
    %576 = vmatprep.subr.mxu0 0.0
    %577 = vmatpush1.msra.mxu0 0.0
    %578 = vmatprep.subr.mxu0 0.0
    %579 = vmatpush1.msra.mxu0 0.0
    %580 = vmatprep.subr.mxu0 0.0
    %581 = vmatpush1.msra.mxu0 0.0
    %582 = vmatprep.subr.mxu0 0.0
    %583 = vmatpush1.msra.mxu0 0.0
    %584 = vmatprep.subr.mxu0 0.0
    %585 = vmatpush1.msra.mxu0 0.0
    %586 = vmatprep.subr.mxu0 0.0
    %587 = vmatpush1.msra.mxu0 0.0
    %588 = vmatprep.subr.mxu0 0.0
    %589 = vmatpush1.msra.mxu0 0.0
    %590 = vmatprep.subr.mxu0 0.0
    %591 = vmatpush1.msra.mxu0 0.0
    %592 = vmatprep.subr.mxu0 0.0
    %593 = vmatpush1.msra.mxu0 0.0
    %594 = vmatprep.mubr.f32.mxu0 0.0
    %595 = vmatmul.mubr.f32.gmra.mrb[0].mxu0 %v519
    %v596 = vpop.f32.mrb[0].mxu0
    %v597 = vadd.f32 0.0, %v596
    %v598 = vpop.f32.mrb[0].mxu0
    %599 = vmatprep.mubr.f32.mxu0 0.0
    %600 = vmatmul.mubr.f32.gmra.mrb[0].mxu0 %v522
    %v601 = vpop.f32.mrb[0].mxu0
    %v602 = vadd.f32 0.0, %v601
    %v603 = vpop.f32.mrb[0].mxu0
    %604 = vmatprep.mubr.f32.mxu0 0.0
    %605 = vmatmul.mubr.f32.gmra.mrb[0].mxu0 %v525
    %v606 = vpop.f32.mrb[0].mxu0
    %v607 = vadd.f32 0.0, %v606
    %v608 = vpop.f32.mrb[0].mxu0
    %609 = vmatprep.mubr.f32.mxu0 0.0
    %610 = vmatmul.mubr.f32.gmra.mrb[0].mxu0 %v528
    %v611 = vpop.f32.mrb[0].mxu0
    %v612 = vadd.f32 0.0, %v611
    %v613 = vpop.f32.mrb[0].mxu0
    %614 = vdwg.mxu0
    %v615 = vsel %vm147, %v597, 0.0
    %616 = vadd.xlane.f32.xlu0 %v615
    %v617 = vpop.xlane.xlu0 %616
    %v618 = vsel %vm147, %v602, 0.0
    %619 = vadd.xlane.f32.xlu0 %v618
    %v620 = vpop.xlane.xlu0 %619
    %v621 = vsel %vm147, %v607, 0.0
    %622 = vadd.xlane.f32.xlu0 %v621
    %v623 = vpop.xlane.xlu0 %622
    %v624 = vsel %vm147, %v612, 0.0
    %625 = vadd.xlane.f32.xlu0 %v624
    %v626 = vpop.xlane.xlu0 %625
    %v627 = vmul.f32 %v597, %v597
    %v628 = vmul.f32 %v602, %v602
    %v629 = vmul.f32 %v607, %v607
    %v630 = vmul.f32 %v612, %v612
    %v631 = vsel %vm147, %v627, 0.0
    %632 = vadd.xlane.f32.xlu0 %v631
    %v633 = vpop.xlane.xlu0 %632
    %v634 = vsel %vm147, %v628, 0.0
    %635 = vadd.xlane.f32.xlu0 %v634
    %v636 = vpop.xlane.xlu0 %635
    %v637 = vsel %vm147, %v629, 0.0
    %638 = vadd.xlane.f32.xlu0 %v637
    %v639 = vpop.xlane.xlu0 %638
    %v640 = vsel %vm147, %v630, 0.0
    %641 = vadd.xlane.f32.xlu0 %v640
    %v642 = vpop.xlane.xlu0 %641
    %v643 = vmul.f32 %v617, 0.125
    %v644 = vmul.f32 %v620, 0.125
    %v645 = vmul.f32 %v623, 0.125
    %v646 = vmul.f32 %v626, 0.125
    %v647 = vmul.f32 %v633, 0.125
    %v648 = vmul.f32 %v636, 0.125
    %v649 = vmul.f32 %v639, 0.125
    %v650 = vmul.f32 %v642, 0.125
    %v651 = vmul.f32 %v643, %v643
    %v652 = vmul.f32 %v644, %v644
    %v653 = vmul.f32 %v645, %v645
    %v654 = vmul.f32 %v646, %v646
    %v655 = vsub.f32 %v647, %v651
    %v656 = vsub.f32 %v648, %v652
    %v657 = vsub.f32 %v649, %v653
    %v658 = vsub.f32 %v650, %v654
    %v659 = vadd.f32 %v655, 1e-05
    %v660 = vadd.f32 %v656, 1e-05
    %v661 = vadd.f32 %v657, 1e-05
    %v662 = vadd.f32 %v658, 1e-05
    %v663 = vrsqrt.pop %v659
    %v664 = vrsqrt.pop %v660
    %v665 = vrsqrt.pop %v661
    %v666 = vrsqrt.pop %v662
    %v667 = vmul.f32 %v30, %v663
    %v668 = vmul.f32 %v31, %v664
    %v669 = vmul.f32 %v32, %v665
    %v670 = vmul.f32 %v33, %v666
    %v671 = vmul.f32 %v643, %v667
    %v672 = vmul.f32 %v644, %v668
    %v673 = vmul.f32 %v645, %v669
    %v674 = vmul.f32 %v646, %v670
    %679 = vrot.lane.b32.xlu0 %v671, 1
    %v680 = vpop.permute.xlu0 %679
    %681 = vrot.lane.b32.xlu0 %v672, 1
    %v682 = vpop.permute.xlu0 %681
    %683 = vrot.lane.b32.xlu0 %v673, 1
    %v684 = vpop.permute.xlu0 %683
    %685 = vrot.lane.b32.xlu0 %v674, 1
    %v686 = vpop.permute.xlu0 %685
    %v691 = vsub.f32 %v30, %v680
    %v692 = vsub.f32 %v31, %v682
    %v693 = vsub.f32 %v32, %v684
    %v694 = vsub.f32 %v33, %v686
    %696 = vset.pattern.permute.xlu0 4
    %697 = vperm.xlu0 %696, %v667
    %v698 = vpop.permute.xlu0 %697
    %701 = vset.pattern.permute.xlu0 4
    %702 = vperm.xlu0 %701, %v668
    %v703 = vpop.permute.xlu0 %702
    %706 = vset.pattern.permute.xlu0 4
    %707 = vperm.xlu0 %706, %v669
    %v708 = vpop.permute.xlu0 %707
    %711 = vset.pattern.permute.xlu0 4
    %712 = vperm.xlu0 %711, %v670
    %v713 = vpop.permute.xlu0 %712
    %v715 = vmul.f32 %v597, %v698
    %v716 = vmul.f32 %v602, %v703
    %v717 = vmul.f32 %v607, %v708
    %v718 = vmul.f32 %v612, %v713
    %720 = vset.pattern.permute.xlu0 5
    %721 = vperm.xlu0 %720, %v691
    %v722 = vpop.permute.xlu0 %721
    %725 = vset.pattern.permute.xlu0 5
    %726 = vperm.xlu0 %725, %v692
    %v727 = vpop.permute.xlu0 %726
    %730 = vset.pattern.permute.xlu0 5
    %731 = vperm.xlu0 %730, %v693
    %v732 = vpop.permute.xlu0 %731
    %735 = vset.pattern.permute.xlu0 5
    %736 = vperm.xlu0 %735, %v694
    %v737 = vpop.permute.xlu0 %736
    %v739 = vadd.f32 %v715, %v722
    %v740 = vadd.f32 %v716, %v727
    %v741 = vadd.f32 %v717, %v732
    %v742 = vadd.f32 %v718, %v737
    %v743 = vmul.f32 %v739, 0.2
    %v744 = vmul.f32 %v740, 0.2
    %v745 = vmul.f32 %v741, 0.2
    %v746 = vmul.f32 %v742, 0.2
    %v747 = vmax.f32 %v739, %v743
    %v748 = vmax.f32 %v740, %v744
    %v749 = vmax.f32 %v741, %v745
    %v750 = vmax.f32 %v742, %v746
    %752 = vset.pattern.permute.xlu0 6
    %753 = vperm.xlu0 %752, %v30
    %v754 = vpop.permute.xlu0 %753
    %757 = vset.pattern.permute.xlu0 6
    %758 = vperm.xlu0 %757, %v31
    %v759 = vpop.permute.xlu0 %758
    %762 = vset.pattern.permute.xlu0 6
    %763 = vperm.xlu0 %762, %v32
    %v764 = vpop.permute.xlu0 %763
    %767 = vset.pattern.permute.xlu0 6
    %768 = vperm.xlu0 %767, %v33
    %v769 = vpop.permute.xlu0 %768
    %v771 = vmul.f32 %v747, %v754
    %v772 = vmul.f32 %v748, %v759
    %v773 = vmul.f32 %v749, %v764
    %v774 = vmul.f32 %v750, %v769
    %v775 = vsel %vm147, %v771, 0.0
    %v776 = vsel %vm147, %v772, 0.0
    %v777 = vadd.f32 %v775, %v776
    %v778 = vsel %vm147, %v773, 0.0
    %v779 = vadd.f32 %v777, %v778
    %v780 = vsel %vm147, %v774, 0.0
    %v781 = vadd.f32 %v779, %v780
    %v782 = vrot.slane %v781, 4
    %v783 = vadd.f32 %v781, %v782
    %v784 = vrot.slane %v783, 2
    %v785 = vadd.f32 %v783, %v784
    %v786 = vrot.slane %v785, 1
    %v787 = vadd.f32 %v785, %v786
    %788 = vset.pattern.permute.xlu0 7
    %789 = vperm.xlu0 %788, %v30
    %v790 = vpop.permute.xlu0 %789
    %v792 = vadd.f32 %v787, %v790
    %vm793 = vcmask 57344
    %794 = vst.msk [vmem:[#allocation5] sm:$0x1] %vm793, %v792
    // Predicated region
    $region18: #{tpu_custom_call.1} parent=1 // pred_check
      _
    $region19: #{tpu_custom_call.1} parent=1 // pred_check_branch
      %796 = sbr.rel (0) target = $region21
    $region20: #{tpu_custom_call.1} parent=1 // pred_region
      %s798 = ssub.s32 16, 16
      %799 = vsyncadd [#allocation4], %s798
      %s801 = sshll.u32 [#allocation5], 4
      %s802 = int_to_ptr.vmem [resolvable:$true] %s801
      %804 = dma.vmem_to_hbm [thread:$0]  %s802, 16, %s3, [#allocation4]
    $region21: #{tpu_custom_call.1} parent=1 // pred_fallthru
      _
    // Predicated region
    $region22: #{tpu_custom_call.1} parent=1 // pred_check
      _
    $region23: #{tpu_custom_call.1} parent=1 // pred_check_branch
      %806 = sbr.rel (0) target = $region25
    $region24: #{tpu_custom_call.1} parent=1 // pred_region
      %807 = dma.done [#allocation4], 16
    $region25: #{tpu_custom_call.1} parent=1 // pred_fallthru
      _
    %808 = vsyncpa [#allocation3], 1
    %809 = vsyncpa [#allocation4], 1

</llo_original>
